<compile_context>
chip_gen: v7x
topology: tpu7x:2x2x1
jax: 0.10.0
libtpu: 0.0.40
codegen_flags: <defaults>
</compile_context>

<pallas_src>
import functools

import jax
import jax.numpy as jnp
from jax import lax
from jax.experimental import pallas as pl
from jax.experimental.pallas import tpu as pltpu


# ---------------------------------------------------------------------------
# Kernels
# ---------------------------------------------------------------------------
def _rope_kernel(inv_freq_ref, lane_off_ref, freqs_ref, *,
                 rows_per_tile, pos_per_row):
    """freqs tile = position * inv_freq, lane-packed (pos_per_row per row)."""
    start = (pl.program_id(0) * rows_per_tile * pos_per_row).astype(jnp.float32)
    # Full-block sublane iota: no 1-lane vreg / XLU lane-broadcast per tile.
    row = lax.broadcasted_iota(jnp.int32, freqs_ref.shape, 0).astype(jnp.float32)
    pos = start + row * float(pos_per_row) + lane_off_ref[...]
    freqs_ref[...] = (pos * inv_freq_ref[...]).astype(freqs_ref.dtype)


def _rope_xpos_kernel(inv_freq_ref, lane_off_ref, intra_scale_ref,
                      tile_scale_ref, freqs_ref, scale_ref, *,
                      rows_per_tile, pos_per_row):
    """freqs tile + xpos scale tile.

    scale = exp((pos - mid) * logs) is factored as
        exp((tile_start - mid) * logs)   -> tile_scale_ref  (1, W) per tile
      * exp((intra_pos) * logs)          -> intra_scale_ref (tile_rows, W) resident
    so there is NO EUP exp in the inner body (binding slot on v7x).
    """
    start = (pl.program_id(0) * rows_per_tile * pos_per_row).astype(jnp.float32)
    row = lax.broadcasted_iota(jnp.int32, freqs_ref.shape, 0).astype(jnp.float32)
    pos = start + row * float(pos_per_row) + lane_off_ref[...]
    freqs_ref[...] = (pos * inv_freq_ref[...]).astype(freqs_ref.dtype)
    scale_ref[...] = (tile_scale_ref[...] * intra_scale_ref[...]).astype(scale_ref.dtype)


# ---------------------------------------------------------------------------
# Module-equivalent wrapper
# ---------------------------------------------------------------------------
class RotaryEmbeddingPallas:
    def __init__(self, dim, use_xpos=False, scale_base=512,
                 interpolation_factor=1.0, base=10000, base_rescale_factor=1.0,
                 out_dtype=jnp.float32):
        assert interpolation_factor >= 1
        base = base * base_rescale_factor ** (dim / (dim - 2))

        # Lane packing: if dim < 128, pack k = 128 // dim positions per output
        # row so HBM stores are full-width (lane-dense).  dim >= 128 -> k = 1.
        if dim < 128 and 128 % dim == 0:
            k = 128 // dim
        else:
            k = 1
        W = k * dim

        self.dim = dim
        self.k = k
        self.W = W
        self.use_xpos = use_xpos
        self.scale_base = float(scale_base)
        # out_dtype is an API/precision decision: bf16 halves the writeback
        # bytes (~2x wall time) if the consumer casts anyway; default keeps the
        # module's f32 semantics.
        self.out_dtype = out_dtype

        exponents = jnp.arange(0, dim, 2, dtype=jnp.float32) / dim
        inv_freq = 1.0 / (base ** exponents)                       # (dim//2,)
        inv_freq_full = jnp.concatenate([inv_freq, inv_freq])      # (dim,)
        # interpolation_factor folded in; tiled to packed width.
        self.inv_freq_row = (
            jnp.tile(inv_freq_full, k) / float(interpolation_factor)
        ).reshape(1, W)
        # per-lane intra-row position offset (lane l belongs to slot l // dim)
        self.lane_off_row = jnp.repeat(
            jnp.arange(k, dtype=jnp.float32), dim).reshape(1, W)

        if use_xpos:
            scale_vec = (jnp.arange(0, dim, 2, dtype=jnp.float32) + 0.4 * dim) / (1.4 * dim)
            scale_full = jnp.concatenate([scale_vec, scale_vec])    # (dim,)
            # log(scale) / scale_base, tiled to packed width.
            self.log_scale_row = (
                jnp.log(jnp.tile(scale_full, k)) / self.scale_base
            ).reshape(1, W)
        else:
            self.log_scale_row = None

    # -- tiling ------------------------------------------------------------
    def _choose_tile_rows(self, rows):
        """Largest tile that keeps the per-step VMEM working set ~<= 12 MiB.

        Working set = double-buffered outputs (+ the resident intra_scale table
        counted double-buffered, conservatively, for xpos).  12 MiB leaves
        headroom under v5e's 16 MiB scoped default; we also raise
        vmem_limit_bytes to 32 MiB explicitly (valid on v5e/v6e/v7x).
        """
        budget = 12 * 1024 * 1024
        bytes_per_elem = 4
        n_out = 2 if self.use_xpos else 1
        buffers = 2 * n_out + (2 if self.use_xpos else 0)
        max_rows = max(1, budget // (buffers * self.W * bytes_per_elem))
        if rows <= max_rows:
            return rows                       # single / full-extent block
        tile = min(max_rows, rows)
        tile = max(16, (tile // 16) * 16)     # sublane-friendly (f32 & bf16)
        return tile

    # -- forward -----------------------------------------------------------
    def __call__(self, seq_len, tile_rows=None):
        k, W, dim = self.k, self.W, self.dim
        rows = pl.cdiv(seq_len, k)            # packed rows (padded positions)
        if tile_rows is None:
            tile_rows = self._choose_tile_rows(rows)
        tile_rows = int(min(tile_rows, rows))
        num_tiles = pl.cdiv(rows, tile_rows)
        grid = (num_tiles,)

        cparams = pltpu.CompilerParams(
            dimension_semantics=("parallel",),
            vmem_limit_bytes=32 * 1024 * 1024,
        )
        param_spec = pl.BlockSpec((1, W), lambda i: (0, 0))          # resident
        out_spec = pl.BlockSpec((tile_rows, W), lambda i: (i, 0))    # streamed
        out_shape_2d = jax.ShapeDtypeStruct((rows, W), self.out_dtype)
        out_bytes = rows * W * jnp.dtype(self.out_dtype).itemsize

        def unpack(x2d):
            # free row-major reshape (rows, k*dim) -> (rows*k, dim), clip pad.
            return x2d.reshape(rows * k, dim)[:seq_len]

        kern_kwargs = dict(rows_per_tile=tile_rows, pos_per_row=k)

        if not self.use_xpos:
            cost = pl.CostEstimate(
                flops=3 * rows * W, transcendentals=0,
                bytes_accessed=out_bytes + 2 * W * 4)
            freqs2d = pl.pallas_call(
                functools.partial(_rope_kernel, **kern_kwargs),
                out_shape=out_shape_2d,
                grid=grid,
                in_specs=[param_spec, param_spec],
                out_specs=out_spec,
                compiler_params=cparams,
                cost_estimate=cost,
            )(self.inv_freq_row, self.lane_off_row)
            return unpack(freqs2d), 1.0

        # ---- xpos path: exp factored out of the kernel --------------------
        mid = float(seq_len // 2)
        # per-tile factor exp((tile_start - mid) * logs): (num_tiles, W)
        tile_start = jnp.arange(num_tiles, dtype=jnp.float32) * float(tile_rows * k) - mid
        tile_scale = jnp.exp(tile_start[:, None] * self.log_scale_row)
        # intra-tile factor exp((r*k + lane_off) * logs): (tile_rows, W), resident
        intra_pos = (jnp.arange(tile_rows, dtype=jnp.float32)[:, None] * float(k)
                     + self.lane_off_row)
        intra_scale = jnp.exp(intra_pos * self.log_scale_row)

        intra_spec = pl.BlockSpec((tile_rows, W), lambda i: (0, 0))   # resident
        tile_scale_spec = pl.BlockSpec((1, W), lambda i: (i, 0))

        cost = pl.CostEstimate(
            flops=4 * rows * W, transcendentals=0,
            bytes_accessed=2 * out_bytes + (tile_rows + num_tiles + 2) * W * 4)
        freqs2d, scale2d = pl.pallas_call(
            functools.partial(_rope_xpos_kernel, **kern_kwargs),
            out_shape=(out_shape_2d, out_shape_2d),
            grid=grid,
            in_specs=[param_spec, param_spec, intra_spec, tile_scale_spec],
            out_specs=(out_spec, out_spec),
            compiler_params=cparams,
            cost_estimate=cost,
        )(self.inv_freq_row, self.lane_off_row, intra_scale, tile_scale)
        return unpack(freqs2d), unpack(scale2d)


# ---------------------------------------------------------------------------
# Pure-JAX reference (mirrors the PyTorch forward exactly)
# ---------------------------------------------------------------------------
def _reference(dim, seq_len, use_xpos, scale_base=512,
               interpolation_factor=1.0, base=10000, base_rescale_factor=1.0):
    base = base * base_rescale_factor ** (dim / (dim - 2))
    inv_freq = 1.0 / base ** (jnp.arange(0, dim, 2, dtype=jnp.float32) / dim)
    t = jnp.arange(seq_len, dtype=jnp.float32) / interpolation_factor
    freqs = jnp.einsum("i,j->ij", t, inv_freq)
    freqs = jnp.concatenate([freqs, freqs], axis=-1)
    if not use_xpos:
        return freqs, 1.0
    power = (jnp.arange(seq_len, dtype=jnp.float32) - seq_len // 2) / scale_base
    scale_vec = (jnp.arange(0, dim, 2, dtype=jnp.float32) + 0.4 * dim) / (1.4 * dim)
    scale = scale_vec[None, :] ** power[:, None]
    scale = jnp.concatenate([scale, scale], axis=-1)
    return freqs, scale


if __name__ == "__main__":
    _ = jax.random.PRNGKey(0)  # forward only takes seq_len; no random inputs

    def check(dim, seq_len, use_xpos, tile_rows=None):
        rope = RotaryEmbeddingPallas(dim, use_xpos=use_xpos, scale_base=512)
        freqs, scale = rope(seq_len, tile_rows=tile_rows)
        freqs = jax.block_until_ready(freqs)
        ref_freqs, ref_scale = _reference(dim, seq_len, use_xpos=use_xpos)
        assert freqs.shape == ref_freqs.shape
        assert jnp.allclose(freqs, ref_freqs, atol=1e-5, rtol=1e-5)
        if use_xpos:
            scale = jax.block_until_ready(scale)
            assert scale.shape == ref_scale.shape
            assert jnp.allclose(scale, ref_scale, atol=1e-5, rtol=1e-5)
        else:
            assert scale == 1.0

    # dim < 128 -> lane-packed (k=4), single block
    check(dim=32, seq_len=8, use_xpos=False)
    check(dim=32, seq_len=8, use_xpos=True)
    # multi-tile packed xpos path (rows=16, tile_rows=8 -> grid=(2,))
    check(dim=32, seq_len=64, use_xpos=True, tile_rows=8)
    # seq_len not a multiple of k -> padded rows are clipped/sliced off
    check(dim=32, seq_len=13, use_xpos=True)
    # dim = 128 -> unpacked path, clipped last block (rows=40, tile_rows=16)
    check(dim=128, seq_len=40, use_xpos=True, tile_rows=16)

    print("KERNEL_OK")
</pallas_src>

<mosaic_0001>
module attributes {stable_mosaic.version = 11 : i64} {
  func.func @_rope_kernel(%arg0: i32, %arg1: memref<1x128xf32, #tpu.memory_space<vmem>>, %arg2: memref<1x128xf32, #tpu.memory_space<vmem>>, %arg3: memref<2x128xf32, #tpu.memory_space<vmem>>) attributes {dimension_semantics = [#tpu.dimension_semantics<parallel>], iteration_bounds = array<i64: 1>, scalar_prefetch = 0 : i64, scratch_operands = 0 : i64, tpu.core_type = #tpu.core_type<tc>, window_params = [{pipeline_mode = #tpu.pipeline_mode<synchronous>, transform_indices = @transform_0, window_bounds = array<i64: 1, 128>}, {pipeline_mode = #tpu.pipeline_mode<synchronous>, transform_indices = @transform_1, window_bounds = array<i64: 1, 128>}, {transform_indices = @transform_2, window_bounds = array<i64: 2, 128>}]} {
    %c2_i32 = arith.constant 2 : i32
    %0 = arith.muli %arg0, %c2_i32 : i32
    %c4_i32 = arith.constant 4 : i32
    %1 = arith.muli %0, %c4_i32 : i32
    %2 = arith.sitofp %1 : i32 to f32
    %3 = tpu.iota {dimensions = array<i32: 0>} : vector<2x128xi32>
    %4 = arith.sitofp %3 : vector<2x128xi32> to vector<2x128xf32>
    %cst = arith.constant 4.000000e+00 : f32
    %5 = vector.broadcast %cst : f32 to vector<2x128xf32>
    %6 = arith.mulf %4, %5 : vector<2x128xf32>
    %7 = vector.broadcast %2 : f32 to vector<2x128xf32>
    %8 = arith.addf %7, %6 : vector<2x128xf32>
    %c0 = arith.constant 0 : index
    %c0_0 = arith.constant 0 : index
    %9 = vector.load %arg2[%c0, %c0_0] : memref<1x128xf32, #tpu.memory_space<vmem>>, vector<1x128xf32>
    %10 = vector.broadcast %9 : vector<1x128xf32> to vector<2x128xf32>
    %11 = arith.addf %8, %10 : vector<2x128xf32>
    %c0_1 = arith.constant 0 : index
    %c0_2 = arith.constant 0 : index
    %12 = vector.load %arg1[%c0_1, %c0_2] : memref<1x128xf32, #tpu.memory_space<vmem>>, vector<1x128xf32>
    %13 = vector.broadcast %12 : vector<1x128xf32> to vector<2x128xf32>
    %14 = arith.mulf %11, %13 : vector<2x128xf32>
    %c0_3 = arith.constant 0 : index
    %c0_4 = arith.constant 0 : index
    %15 = vector.load %arg3[%c0_3, %c0_4] : memref<2x128xf32, #tpu.memory_space<vmem>>, vector<2x128xf32>
    tpu.vector_store %arg3[%c0_3, %c0_4], %14 {strides = array<i32>} : memref<2x128xf32, #tpu.memory_space<vmem>>, vector<2x128xf32>,
    return
  }
  func.func @transform_0(%arg0: i32) -> (i32, i32) {
    %c0_i32 = arith.constant 0 : i32
    %c0_i32_0 = arith.constant 0 : i32
    %c0_i32_1 = arith.constant 0 : i32
    return %c0_i32, %c0_i32_0 : i32, i32
  }
  func.func @transform_1(%arg0: i32) -> (i32, i32) {
    %c0_i32 = arith.constant 0 : i32
    %c0_i32_0 = arith.constant 0 : i32
    %c0_i32_1 = arith.constant 0 : i32
    return %c0_i32, %c0_i32_0 : i32, i32
  }
  func.func @transform_2(%arg0: i32) -> (i32, i32) {
    %c0_i32 = arith.constant 0 : i32
    %c0_i32_0 = arith.constant 0 : i32
    return %arg0, %c0_i32 : i32, i32
  }
}

</mosaic_0001>

<llo_original>
// kernel: tpu_custom_call.1
$region0: #{tpu_custom_call.1}
  #allocation0 [shape = 'u32[]', space=smem, size = 0x4, offset = 0x4, fixed_abs, tag = 'smem constant byte address 0x4 - core index']
  #allocation1 [shape = 'u32[144,128]{1,0:T(1,128)}', space=vmem, size = 0x12000, scoped, tag = 'internal scratch']
  %s0 = inlined_call_operand.hbm [shape: f32[1,128], index: 0, kind: input, shape index: {}]
  %s1 = inlined_call_operand.vmem [shape: f32[1,128], index: 1, kind: input, shape index: {}]
  %s2 = inlined_call_operand.hbm [shape: f32[2,128], index: 2, kind: output, shape index: {}]
  %s3 = sld [smem:[#allocation0]]
  $region22: #{tpu_custom_call.1} parent=0
    _
  %s5 = ssub.s32 1, %s3
  %s6 = scalar_select 0, %s5, %s3
  $region1: #{tpu_custom_call.1} parent=0
    #allocation2 [shape = 'u8[512]{0}', space=vmem, size = 0x400, scoped, tag = 'input window, operand 0, single buffered']
    #allocation3 [shape = 's32[1]{0}', space=sflag, size = 0x4, scoped, tag = 'scoped memory for tpu_custom_call.1']
    #allocation4 [shape = 's32[1]{0}', space=sflag, size = 0x4, scoped, tag = 'scoped memory for tpu_custom_call.1']
    #allocation5 [shape = 'u8[1024]{0}', space=vmem, size = 0x400, scoped, tag = 'output window, operand 0, single buffered']
    %7 = vsyncpa [#allocation3], 0
    %8 = vsyncpa [#allocation4], 0
    // Predicated region
    $region2: #{tpu_custom_call.1} parent=1 // pred_check
      _
    $region3: #{tpu_custom_call.1} parent=1 // pred_check_branch
      %10 = sbr.rel (0) target = $region5
    $region4: #{tpu_custom_call.1} parent=1 // pred_region
      %s12 = ssub.s32 16, 16
      %13 = vsyncadd [#allocation3], %s12
      %s15 = sshll.u32 [#allocation2], 4
      %s16 = int_to_ptr.vmem [resolvable:$true] %s15
      %18 = dma.hbm_to_vmem [thread:$0]  %s0, 16, %s16, [#allocation3]
    $region5: #{tpu_custom_call.1} parent=1 // pred_fallthru
      _
    // Predicated region
    $region6: #{tpu_custom_call.1} parent=1 // pred_check
      _
    $region7: #{tpu_custom_call.1} parent=1 // pred_check_branch
      %20 = sbr.rel (0) target = $region9
    $region8: #{tpu_custom_call.1} parent=1 // pred_region
      _
    $region9: #{tpu_custom_call.1} parent=1 // pred_fallthru
      _
    // Predicated region
    $region10: #{tpu_custom_call.1} parent=1 // pred_check
      _
    $region11: #{tpu_custom_call.1} parent=1 // pred_check_branch
      %22 = sbr.rel (0) target = $region13
    $region12: #{tpu_custom_call.1} parent=1 // pred_region
      %23 = dma.done [#allocation3], 16
    $region13: #{tpu_custom_call.1} parent=1 // pred_fallthru
      _
    %s24 = smul.u32 0, 8
    %s25 = scvt.s32.f32 %s24
    %v26 = vlaneseq
    %v27 = vshrl.u32 %v26, 7
    %v28 = vcvt.s32.f32 %v27
    %v29 = vmul.f32 %v28, 4.0
    %v30 = vstv %s25
    %v31 = vadd.f32 %v30, %v29
    %v32 = vld [vmem:[%s1] sm:$0x1]
    %v34 = vlaneseq
    %v35 = vshrl.u32 %v34, 7
    %v36 = vsub.s32 0, %v35
    %v37 = vrot.slane %v32, %v36
    %v39 = vadd.f32 %v31, %v37
    %v40 = vld [vmem:[#allocation2] sm:$0x1]
    %v42 = vlaneseq
    %v43 = vshrl.u32 %v42, 7
    %v44 = vsub.s32 0, %v43
    %v45 = vrot.slane %v40, %v44
    %v47 = vmul.f32 %v39, %v45
    %48 = vst [vmem:[#allocation5] sm:$0x3] %v47
    // Predicated region
    $region14: #{tpu_custom_call.1} parent=1 // pred_check
      _
    $region15: #{tpu_custom_call.1} parent=1 // pred_check_branch
      %50 = sbr.rel (0) target = $region17
    $region16: #{tpu_custom_call.1} parent=1 // pred_region
      %s52 = ssub.s32 32, 32
      %53 = vsyncadd [#allocation4], %s52
      %s55 = sshll.u32 [#allocation5], 4
      %s56 = int_to_ptr.vmem [resolvable:$true] %s55
      %58 = dma.vmem_to_hbm [thread:$0]  %s56, 32, %s2, [#allocation4]
    $region17: #{tpu_custom_call.1} parent=1 // pred_fallthru
      _
    // Predicated region
    $region18: #{tpu_custom_call.1} parent=1 // pred_check
      _
    $region19: #{tpu_custom_call.1} parent=1 // pred_check_branch
      %60 = sbr.rel (0) target = $region21
    $region20: #{tpu_custom_call.1} parent=1 // pred_region
      %61 = dma.done [#allocation4], 32
    $region21: #{tpu_custom_call.1} parent=1 // pred_fallthru
      _
    %62 = vsyncpa [#allocation3], 1
    %63 = vsyncpa [#allocation4], 1

</llo_original>
